<compile_context>
chip_gen: v5e
topology: v5e:2x2
jax: 0.10.0
libtpu: 0.0.40
codegen_flags: <defaults>
</compile_context>

<pallas_src>
import functools

import jax
import jax.numpy as jnp
from jax.experimental import pallas as pl
from jax.experimental.pallas import tpu as pltpu


def _se_kernel(x_ref, m1_ref, w2t_ref, pb_ref, o_ref):
    # x_ref   : (TB, c*w)  flat per-batch payload (input dtype)
    # m1_ref  : (c*w, h)   fused (pool/w) @ W1^T  (input dtype)
    # w2t_ref : (h, c)     fc[2].weight.T         (f32)
    # pb_ref  : (c, c*w)   0/1 channel->lane broadcast matrix (input dtype)
    # o_ref   : (TB, c*w)
    x = x_ref[...]                                                       # (TB, c*w)

    # Fused AdaptiveAvgPool1d(1) + Linear(c->h, bias=False) + ReLU:
    # one MXU matmul with f32 accumulation, no (TB, c) pooled intermediate.
    hid = jnp.dot(x, m1_ref[...], preferred_element_type=jnp.float32)   # (TB, h)
    hid = jnp.maximum(hid, 0.0)

    # Linear(h->c, bias=False) + Sigmoid on the small (TB, c) tensor.
    s = jax.nn.sigmoid(
        jnp.dot(hid, w2t_ref[...], preferred_element_type=jnp.float32))  # (TB, c)

    # Broadcast each channel's scale across its w contiguous lanes with the
    # 0/1 selection matrix — pure selection, exact in the input dtype, so no
    # full-block f32 intermediate and no f32->input-dtype pack of the block.
    scale = jnp.dot(s.astype(x.dtype), pb_ref[...],
                    preferred_element_type=x.dtype)                      # (TB, c*w)

    o_ref[...] = x * scale


def _device_info():
    """(physical VMEM bytes, multi-TensorCore?) with safe fallbacks."""
    vmem_phys = 64 << 20          # smallest per-TC VMEM across supported parts
    multi_core = False
    try:
        info = pltpu.get_tpu_info()
        vmem_phys = int(getattr(info, "vmem_capacity_bytes", vmem_phys))
    except Exception:
        pass
    try:
        kind = jax.devices()[0].device_kind.lower()
        # v7x (and megacore v4/v5p) shard "parallel" grid axes across 2 TCs.
        multi_core = any(tag in kind for tag in ("v7", "v4", "v5p"))
    except Exception:
        pass
    return vmem_phys, multi_core


def _pick_batch_tile(b, bytes_per_batch, itemsize, multi_core):
    """~4 MiB of input per block, rounded to the dtype's sublane pack."""
    pack = max(8, 32 // max(1, itemsize))          # 8 f32 / 16 bf16 / 32 int8
    target = 4 << 20                               # sweep 2-8 MiB when tuning
    tb = max(1, target // max(1, bytes_per_batch))

    if tb >= b:
        if multi_core and b >= 2 * pack:
            # Split the batch into two pack-aligned blocks so the 2nd TC works.
            half = -(-(b // 2) // pack) * pack
            return int(max(pack, min(half, b))), pack
        return int(b), pack                        # single block = full batch

    tb = max(pack, (tb // pack) * pack)
    if multi_core:
        steps = -(-b // tb)
        if steps % 2 == 1:
            # Nudge toward an even step count so both TCs stay busy at the tail.
            tb2 = max(pack, ((-(-b // (steps + 1)) + pack - 1) // pack) * pack)
            if -(-b // tb2) % 2 == 0:
                tb = tb2
    return int(min(tb, b)), pack


def _vmem_estimate(tb, cw, h, c, itemsize):
    """Honest budget: double-buffered x/out blocks AND constants + kernel
    intermediates ((TB, c*w) scale in input dtype, hid/s in f32) + slack."""
    blk = tb * cw * itemsize
    est = 4 * blk                                            # x + out, 2 bufs each
    est += 2 * (cw * h * itemsize + h * c * 4 + c * cw * itemsize)  # constants x2
    est += blk                                               # scale intermediate
    est += 2 * tb * (h + c) * 4                              # hid / s (+ copies)
    est += 2 << 20                                           # compiler scratch slack
    return est


def se_layer(x, w1, w2):
    """x: (b, w, c); w1: (h, c) = fc[0].weight; w2: (c, h) = fc[2].weight."""
    b, w, c = x.shape
    h = w1.shape[0]
    cw = c * w
    itemsize = x.dtype.itemsize

    # torch `.view(b, c, w)` reinterprets the contiguous buffer, so the flat
    # (b, c*w) payload is the exact working representation (free reshape).
    xf = jnp.reshape(x, (b, cw))

    # Constant matrices (channel of flat index i is i // w), built in f32 then
    # cast so the in-kernel matmuls never upcast the streamed block.
    ch_of = jnp.arange(cw, dtype=jnp.int32) // w
    onehot = (ch_of[:, None] == jnp.arange(c, dtype=jnp.int32)[None, :]
              ).astype(jnp.float32)                              # (c*w, c)
    # Fused pooling + FC1:  M1 = (onehot / w) @ W1^T   (exact up to f32 rounding;
    # folds the 1/w mean scale, so no divide and no pooled intermediate).
    m1 = ((onehot * (1.0 / w)) @ w1.T.astype(jnp.float32)).astype(x.dtype)  # (c*w, h)
    w2t = w2.T.astype(jnp.float32)                               # (h, c)
    p_bcast = onehot.T.astype(x.dtype)                           # (c, c*w), 0/1 exact
    # TODO(synk): for very large c (~128+) the 0/1 broadcast matmul adds ~2c MXU
    # flops/element and the (c, c*w) constant grows quadratically; switch to a
    # two-pass structure (scales kernel + lane-repeat rescale kernel) there.

    vmem_phys, multi_core = _device_info()
    vmem_cap = (vmem_phys * 3) // 4        # ≈48 MiB on v7x, ≈96 MiB on v5e/v6e

    tb, pack = _pick_batch_tile(b, cw * itemsize, itemsize, multi_core)
    est = _vmem_estimate(tb, cw, h, c, itemsize)
    while est > vmem_cap and tb > pack:    # shrink tile until it truly fits
        tb = max(pack, ((tb // 2) // pack) * pack)
        est = _vmem_estimate(tb, cw, h, c, itemsize)

    grid = (pl.cdiv(b, tb),)
    vmem_limit = int(min(vmem_cap, max(est, 4 << 20)))

    cost = pl.CostEstimate(
        flops=int(2 * b * cw * h + 2 * b * h * c + 2 * b * c * cw + b * cw),
        transcendentals=int(b * c),
        bytes_accessed=int(2 * b * cw * itemsize
                           + cw * h * itemsize + h * c * 4 + c * cw * itemsize),
    )

    out_flat = pl.pallas_call(
        _se_kernel,
        out_shape=jax.ShapeDtypeStruct((b, cw), x.dtype),
        grid=grid,
        in_specs=[
            pl.BlockSpec((tb, cw), lambda i: (i, 0)),   # x, flat & lane-dense
            pl.BlockSpec((cw, h), lambda i: (0, 0)),    # fused pool+FC1 matrix
            pl.BlockSpec((h, c), lambda i: (0, 0)),     # fc2 weight, transposed
            pl.BlockSpec((c, cw), lambda i: (0, 0)),    # channel->lane broadcast
        ],
        out_specs=pl.BlockSpec((tb, cw), lambda i: (i, 0)),
        compiler_params=pltpu.CompilerParams(
            dimension_semantics=("parallel",),
            vmem_limit_bytes=vmem_limit,
        ),
        cost_estimate=cost,
    )(xf, m1, w2t, p_bcast)

    # final torch `.view(b, w, c)` — again a pure reinterpretation.
    return jnp.reshape(out_flat, (b, w, c))


def se_layer_ref(x, w1, w2):
    """Pure-JAX reference mirroring the PyTorch forward exactly."""
    b, w, c = x.shape
    xv = jnp.reshape(x, (b, c, w))
    y = jnp.mean(xv, axis=-1)                                   # (b, c)
    y = jnp.maximum(y @ w1.T, 0.0)                              # (b, h)
    y = jax.nn.sigmoid(y @ w2.T)                                # (b, c)
    out = xv * y[:, :, None]                                    # (b, c, w)
    return jnp.reshape(out, (b, w, c))


if __name__ == "__main__":
    # Shapes implied by forward: x is (b, w, c); reduction=5 => c=20, hidden=4.
    b, w, c = 2, 16, 20
    reduction = 5
    hdim = c // reduction

    key = jax.random.PRNGKey(0)
    kx, k1, k2 = jax.random.split(key, 3)

    x = jax.random.normal(kx, (b, w, c), dtype=jnp.float32)
    # Deterministic synthetic weights (PyTorch Linear weight shapes, no bias).
    w1 = jax.random.uniform(k1, (hdim, c), dtype=jnp.float32,
                            minval=-1.0, maxval=1.0) / jnp.sqrt(c)
    w2 = jax.random.uniform(k2, (c, hdim), dtype=jnp.float32,
                            minval=-1.0, maxval=1.0) / jnp.sqrt(hdim)

    out = jax.block_until_ready(se_layer(x, w1, w2))
    ref = se_layer_ref(x, w1, w2)

    assert out.shape == (b, w, c)
    assert jnp.allclose(out, ref, atol=1e-5, rtol=1e-5)

    print("KERNEL_OK")
</pallas_src>

<mosaic_0001>
module attributes {stable_mosaic.version = 11 : i64} {
  func.func @_se_kernel(%arg0: i32, %arg1: memref<2x320xf32, #tpu.memory_space<vmem>>, %arg2: memref<320x4xf32, #tpu.memory_space<vmem>>, %arg3: memref<4x20xf32, #tpu.memory_space<vmem>>, %arg4: memref<20x320xf32, #tpu.memory_space<vmem>>, %arg5: memref<2x320xf32, #tpu.memory_space<vmem>>) attributes {dimension_semantics = [#tpu.dimension_semantics<parallel>], iteration_bounds = array<i64: 1>, scalar_prefetch = 0 : i64, scratch_operands = 0 : i64, tpu.core_type = #tpu.core_type<tc>, window_params = [{transform_indices = @transform_0, window_bounds = array<i64: 2, 320>}, {pipeline_mode = #tpu.pipeline_mode<synchronous>, transform_indices = @transform_1, window_bounds = array<i64: 320, 4>}, {pipeline_mode = #tpu.pipeline_mode<synchronous>, transform_indices = @transform_2, window_bounds = array<i64: 4, 20>}, {pipeline_mode = #tpu.pipeline_mode<synchronous>, transform_indices = @transform_3, window_bounds = array<i64: 20, 320>}, {transform_indices = @transform_4, window_bounds = array<i64: 2, 320>}]} {
    %c0 = arith.constant 0 : index
    %c0_0 = arith.constant 0 : index
    %0 = vector.load %arg1[%c0, %c0_0] : memref<2x320xf32, #tpu.memory_space<vmem>>, vector<2x320xf32>
    %c0_1 = arith.constant 0 : index
    %c0_2 = arith.constant 0 : index
    %1 = vector.load %arg2[%c0_1, %c0_2] : memref<320x4xf32, #tpu.memory_space<vmem>>, vector<320x4xf32>
    %cst = arith.constant dense<0.000000e+00> : vector<2x4xf32>
    %2 = tpu.matmul %0, %1, %cst {dimension_numbers = #tpu.dot_dimension_numbers<[1], [0], [0], [1], [0, 0, 1, 1], [], []>} : vector<2x320xf32>, vector<320x4xf32>, vector<2x4xf32> -> vector<2x4xf32>
    %cst_3 = arith.constant 0.000000e+00 : f32
    %3 = vector.broadcast %cst_3 : f32 to vector<2x4xf32>
    %4 = arith.maximumf %2, %3 : vector<2x4xf32>
    %c0_4 = arith.constant 0 : index
    %c0_5 = arith.constant 0 : index
    %5 = vector.load %arg3[%c0_4, %c0_5] : memref<4x20xf32, #tpu.memory_space<vmem>>, vector<4x20xf32>
    %cst_6 = arith.constant dense<0.000000e+00> : vector<2x20xf32>
    %6 = tpu.matmul %4, %5, %cst_6 {dimension_numbers = #tpu.dot_dimension_numbers<[1], [0], [0], [1], [0, 0, 1, 1], [], []>} : vector<2x4xf32>, vector<4x20xf32>, vector<2x20xf32> -> vector<2x20xf32>
    %7 = arith.negf %6 : vector<2x20xf32>
    %8 = math.exp %7 : vector<2x20xf32>
    %cst_7 = arith.constant 1.000000e+00 : f32
    %9 = vector.broadcast %cst_7 : f32 to vector<2x20xf32>
    %10 = arith.addf %9, %8 : vector<2x20xf32>
    %11 = arith.divf %9, %10 : vector<2x20xf32>
    %c0_8 = arith.constant 0 : index
    %c0_9 = arith.constant 0 : index
    %12 = vector.load %arg4[%c0_8, %c0_9] : memref<20x320xf32, #tpu.memory_space<vmem>>, vector<20x320xf32>
    %cst_10 = arith.constant dense<0.000000e+00> : vector<2x320xf32>
    %13 = tpu.matmul %11, %12, %cst_10 {dimension_numbers = #tpu.dot_dimension_numbers<[1], [0], [0], [1], [0, 0, 1, 1], [], []>} : vector<2x20xf32>, vector<20x320xf32>, vector<2x320xf32> -> vector<2x320xf32>
    %14 = arith.mulf %0, %13 : vector<2x320xf32>
    %c0_11 = arith.constant 0 : index
    %c0_12 = arith.constant 0 : index
    %15 = vector.load %arg5[%c0_11, %c0_12] : memref<2x320xf32, #tpu.memory_space<vmem>>, vector<2x320xf32>
    tpu.vector_store %arg5[%c0_11, %c0_12], %14 {strides = array<i32>} : memref<2x320xf32, #tpu.memory_space<vmem>>, vector<2x320xf32>,
    return
  }
  func.func @transform_0(%arg0: i32) -> (i32, i32) {
    %c0_i32 = arith.constant 0 : i32
    %c0_i32_0 = arith.constant 0 : i32
    return %arg0, %c0_i32 : i32, i32
  }
  func.func @transform_1(%arg0: i32) -> (i32, i32) {
    %c0_i32 = arith.constant 0 : i32
    %c0_i32_0 = arith.constant 0 : i32
    %c0_i32_1 = arith.constant 0 : i32
    return %c0_i32, %c0_i32_0 : i32, i32
  }
  func.func @transform_2(%arg0: i32) -> (i32, i32) {
    %c0_i32 = arith.constant 0 : i32
    %c0_i32_0 = arith.constant 0 : i32
    %c0_i32_1 = arith.constant 0 : i32
    return %c0_i32, %c0_i32_0 : i32, i32
  }
  func.func @transform_3(%arg0: i32) -> (i32, i32) {
    %c0_i32 = arith.constant 0 : i32
    %c0_i32_0 = arith.constant 0 : i32
    %c0_i32_1 = arith.constant 0 : i32
    return %c0_i32, %c0_i32_0 : i32, i32
  }
  func.func @transform_4(%arg0: i32) -> (i32, i32) {
    %c0_i32 = arith.constant 0 : i32
    %c0_i32_0 = arith.constant 0 : i32
    return %arg0, %c0_i32 : i32, i32
  }
}

</mosaic_0001>

<llo_original>
// kernel: tpu_custom_call.1
$region0: #{tpu_custom_call.1}
  #allocation0 [shape = 'u32[]', space=smem, size = 0x4, offset = 0x4, fixed_abs, tag = 'smem constant byte address 0x4 - core index']
  #allocation1 [shape = 'u32[72,128]{1,0:T(1,128)}', space=vmem, size = 0x9000, scoped, tag = 'internal scratch']
  %s0 = inlined_call_operand.vmem [shape: f32[2,320], index: 0, kind: input, shape index: {}]
  %s1 = inlined_call_operand.vmem [shape: f32[320,4], index: 1, kind: input, shape index: {}]
  %s2 = inlined_call_operand.vmem [shape: f32[4,20], index: 2, kind: input, shape index: {}]
  %s3 = inlined_call_operand.vmem [shape: f32[20,320], index: 3, kind: input, shape index: {}]
  %s4 = inlined_call_operand.hbm [shape: f32[2,320], index: 4, kind: output, shape index: {}]
  %s5 = sld [smem:[#allocation0]]
  $region26: #{tpu_custom_call.1} parent=0
    _
  %s7 = ssub.s32 1, %s5
  %s8 = scalar_select 0, %s7, %s5
  $region1: #{tpu_custom_call.1} parent=0
    #allocation2 [shape = 'u8[3072]{0}', space=vmem, size = 0xc00, scoped, tag = 'output window, operand 0, single buffered']
    #allocation3 [shape = 's32[1]{0}', space=sflag, size = 0x4, scoped, tag = 'scoped memory for tpu_custom_call.1']
    %9 = vsyncpa [#allocation3], 0
    // Predicated region
    $region2: #{tpu_custom_call.1} parent=1 // pred_check
      _
    $region3: #{tpu_custom_call.1} parent=1 // pred_check_branch
      %11 = sbr.rel (0) target = $region5
    $region4: #{tpu_custom_call.1} parent=1 // pred_region
      _
    $region5: #{tpu_custom_call.1} parent=1 // pred_fallthru
      _
    // Predicated region
    $region6: #{tpu_custom_call.1} parent=1 // pred_check
      _
    $region7: #{tpu_custom_call.1} parent=1 // pred_check_branch
      %13 = sbr.rel (0) target = $region9
    $region8: #{tpu_custom_call.1} parent=1 // pred_region
      _
    $region9: #{tpu_custom_call.1} parent=1 // pred_fallthru
      _
    // Predicated region
    $region10: #{tpu_custom_call.1} parent=1 // pred_check
      _
    $region11: #{tpu_custom_call.1} parent=1 // pred_check_branch
      %15 = sbr.rel (0) target = $region13
    $region12: #{tpu_custom_call.1} parent=1 // pred_region
      _
    $region13: #{tpu_custom_call.1} parent=1 // pred_fallthru
      _
    // Predicated region
    $region14: #{tpu_custom_call.1} parent=1 // pred_check
      _
    $region15: #{tpu_custom_call.1} parent=1 // pred_check_branch
      %17 = sbr.rel (0) target = $region17
    $region16: #{tpu_custom_call.1} parent=1 // pred_region
      _
    $region17: #{tpu_custom_call.1} parent=1 // pred_fallthru
      _
    %v18 = vld [vmem:[%s0] sm:$0x3f]
    %v19 = vld [vmem:[%s1] sm:$0xff]
    %v20 = vld [vmem:[%s1 + $0x8] sm:$0xff]
    %v21 = vld [vmem:[%s1 + $0x10] sm:$0xff]
    %v22 = vld [vmem:[%s1 + $0x18] sm:$0xff]
    %v23 = vld [vmem:[%s1 + $0x20] sm:$0xff]
    %v24 = vld [vmem:[%s1 + $0x28] sm:$0xff]
    %v25 = vld [vmem:[%s1 + $0x30] sm:$0xff]
    %v26 = vld [vmem:[%s1 + $0x38] sm:$0xff]
    %v27 = vld [vmem:[%s1 + $0x40] sm:$0xff]
    %v28 = vld [vmem:[%s1 + $0x48] sm:$0xff]
    %v29 = vld [vmem:[%s1 + $0x50] sm:$0xff]
    %v30 = vld [vmem:[%s1 + $0x58] sm:$0xff]
    %v31 = vld [vmem:[%s1 + $0x60] sm:$0xff]
    %v32 = vld [vmem:[%s1 + $0x68] sm:$0xff]
    %v33 = vld [vmem:[%s1 + $0x70] sm:$0xff]
    %v34 = vld [vmem:[%s1 + $0x78] sm:$0xff]
    %v35 = vld [vmem:[%s1 + $0x80] sm:$0xff]
    %v36 = vld [vmem:[%s1 + $0x88] sm:$0xff]
    %v37 = vld [vmem:[%s1 + $0x90] sm:$0xff]
    %v38 = vld [vmem:[%s1 + $0x98] sm:$0xff]
    %v39 = vld [vmem:[%s1 + $0xa0] sm:$0xff]
    %v40 = vld [vmem:[%s1 + $0xa8] sm:$0xff]
    %v41 = vld [vmem:[%s1 + $0xb0] sm:$0xff]
    %v42 = vld [vmem:[%s1 + $0xb8] sm:$0xff]
    %v43 = vld [vmem:[%s1 + $0xc0] sm:$0xff]
    %v44 = vld [vmem:[%s1 + $0xc8] sm:$0xff]
    %v45 = vld [vmem:[%s1 + $0xd0] sm:$0xff]
    %v46 = vld [vmem:[%s1 + $0xd8] sm:$0xff]
    %v47 = vld [vmem:[%s1 + $0xe0] sm:$0xff]
    %v48 = vld [vmem:[%s1 + $0xe8] sm:$0xff]
    %v49 = vld [vmem:[%s1 + $0xf0] sm:$0xff]
    %v50 = vld [vmem:[%s1 + $0xf8] sm:$0xff]
    %v51 = vld [vmem:[%s1 + $0x100] sm:$0xff]
    %v52 = vld [vmem:[%s1 + $0x108] sm:$0xff]
    %v53 = vld [vmem:[%s1 + $0x110] sm:$0xff]
    %v54 = vld [vmem:[%s1 + $0x118] sm:$0xff]
    %v55 = vld [vmem:[%s1 + $0x120] sm:$0xff]
    %v56 = vld [vmem:[%s1 + $0x128] sm:$0xff]
    %v57 = vld [vmem:[%s1 + $0x130] sm:$0xff]
    %v58 = vld [vmem:[%s1 + $0x138] sm:$0xff]
    %60 = vst [vmem:[#allocation1] ss:$4 sm:$0xff] %v18
    %v61 = vld.sshfl [vmem:[#allocation1] sm:$0xff pattern:$0x73625140]
    %v62 = vld.sshfl [vmem:[#allocation1 + $0x8] sm:$0xff pattern:$0x73625140]
    %v63 = vld.sshfl [vmem:[#allocation1 + $0x10] sm:$0xff pattern:$0x73625140]
    %vm66 = vcmask 523264
    %v67 = vsel %vm66, %v63, 0
    %69 = vmatpush.msra.mxu0 %v34
    %70 = vmatpush.msra.mxu0 %v33
    %71 = vmatpush.msra.mxu0 %v32
    %72 = vmatpush.msra.mxu0 %v31
    %73 = vmatpush.msra.mxu0 %v30
    %74 = vmatpush.msra.mxu0 %v29
    %75 = vmatpush.msra.mxu0 %v28
    %76 = vmatpush.msra.mxu0 %v27
    %77 = vmatpush.msra.mxu0 %v26
    %78 = vmatpush.msra.mxu0 %v25
    %79 = vmatpush.msra.mxu0 %v24
    %80 = vmatpush.msra.mxu0 %v23
    %81 = vmatpush.msra.mxu0 %v22
    %82 = vmatpush.msra.mxu0 %v21
    %83 = vmatpush.msra.mxu0 %v20
    %84 = vmatpush.msra.mxu0 %v19
    %85 = vmatmul.f32.gmra.mxu0 %v61
    %v86 = vpop.f32.mrf.mxu0
    %v87 = vadd.f32 0.0, %v86
    %88 = vdwg.mxu0
    %89 = vmatpush.msra.mxu0 %v50
    %90 = vmatpush.msra.mxu0 %v49
    %91 = vmatpush.msra.mxu0 %v48
    %92 = vmatpush.msra.mxu0 %v47
    %93 = vmatpush.msra.mxu0 %v46
    %94 = vmatpush.msra.mxu0 %v45
    %95 = vmatpush.msra.mxu0 %v44
    %96 = vmatpush.msra.mxu0 %v43
    %97 = vmatpush.msra.mxu0 %v42
    %98 = vmatpush.msra.mxu0 %v41
    %99 = vmatpush.msra.mxu0 %v40
    %100 = vmatpush.msra.mxu0 %v39
    %101 = vmatpush.msra.mxu0 %v38
    %102 = vmatpush.msra.mxu0 %v37
    %103 = vmatpush.msra.mxu0 %v36
    %104 = vmatpush.msra.mxu0 %v35
    %105 = vmatmul.f32.gmra.mxu0 %v62
    %v106 = vpop.f32.mrf.mxu0
    %v107 = vadd.f32 %v87, %v106
    %108 = vdwg.mxu0
    %109 = vmatpush.msra.mxu0 0.0
    %110 = vmatpush.msra.mxu0 0.0
    %111 = vmatpush.msra.mxu0 0.0
    %112 = vmatpush.msra.mxu0 0.0
    %113 = vmatpush.msra.mxu0 0.0
    %114 = vmatpush.msra.mxu0 0.0
    %115 = vmatpush.msra.mxu0 0.0
    %116 = vmatpush.msra.mxu0 0.0
    %117 = vmatpush.msra.mxu0 %v58
    %118 = vmatpush.msra.mxu0 %v57
    %119 = vmatpush.msra.mxu0 %v56
    %120 = vmatpush.msra.mxu0 %v55
    %121 = vmatpush.msra.mxu0 %v54
    %122 = vmatpush.msra.mxu0 %v53
    %123 = vmatpush.msra.mxu0 %v52
    %124 = vmatpush.msra.mxu0 %v51
    %125 = vmatmul.f32.gmra.mxu0 %v67
    %v126 = vpop.f32.mrf.mxu0
    %v127 = vadd.f32 %v107, %v126
    %128 = vdwg.mxu0
    %v129 = vmax.f32 %v127, 0.0
    %v130 = vld [vmem:[%s2] sm:$0xf]
    %vm131 = vcmask 31744
    %v133 = vsel %vm131, %v129, 0
    %vm135 = vcmask 1043456
    %v137 = vsel %vm135, %v130, 0
    %139 = vmatpush.msra.mxu0 0.0
    %140 = vmatpush.msra.mxu0 0.0
    %141 = vmatpush.msra.mxu0 0.0
    %142 = vmatpush.msra.mxu0 0.0
    %143 = vmatpush.msra.mxu0 0.0
    %144 = vmatpush.msra.mxu0 0.0
    %145 = vmatpush.msra.mxu0 0.0
    %146 = vmatpush.msra.mxu0 0.0
    %147 = vmatpush.msra.mxu0 0.0
    %148 = vmatpush.msra.mxu0 0.0
    %149 = vmatpush.msra.mxu0 0.0
    %150 = vmatpush.msra.mxu0 0.0
    %151 = vmatpush.msra.mxu0 0.0
    %152 = vmatpush.msra.mxu0 0.0
    %153 = vmatpush.msra.mxu0 0.0
    %154 = vmatpush.msra.mxu0 %v137
    %155 = vmatmul.f32.gmra.mxu0 %v133
    %v156 = vpop.f32.mrf.mxu0
    %v157 = vadd.f32 0.0, %v156
    %158 = vdwg.mxu0
    %v159 = vxor.u32 %v157, 2147483648
    %v160 = vmul.f32 %v159, 1.442695
    %v161 = vpow.pop %v160
    %v162 = vadd.f32 %v161, 1.0
    %v163 = vrcp.pop %v162
    %v164 = vmul.f32 %v162, %v163
    %v165 = vsub.f32 1.0, %v164
    %v166 = vmul.f32 %v163, %v165
    %v167 = vadd.f32 %v163, %v166
    %vm168 = vweird.f32 %v162
    %vm169 = vweird.f32 %v163
    %vm170 = vmor %vm168, %vm169
    %v171 = vsel %vm170, %v163, %v167
    %v172 = vand.u32 2147483647, %v162
    %vm173 = vcmp.eq.f32.partialorder %v172, 8.507059e+37
    %v174 = vand.u32 %v162, 2147483648
    %v175 = vor.u32 1.1754944e-38, %v174
    %v176 = vsel %vm173, %v175, %v171
    %v177 = vmul.f32 1.0, %v176
    %v178 = vld [vmem:[%s3] sm:$0xff]
    %v179 = vld [vmem:[%s3 + $0x8] sm:$0xff]
    %v180 = vld [vmem:[%s3 + $0x10] sm:$0xff]
    %v181 = vld [vmem:[%s3 + $0x18] sm:$0xff]
    %v182 = vld [vmem:[%s3 + $0x20] sm:$0xff]
    %v183 = vld [vmem:[%s3 + $0x28] sm:$0xff]
    %v184 = vld [vmem:[%s3 + $0x30] sm:$0xf]
    %v185 = vld [vmem:[%s3 + $0x38] sm:$0xf]
    %v186 = vld [vmem:[%s3 + $0x40] sm:$0xf]
    %vm187 = vcmask 162816
    %v189 = vsel %vm187, %v177, 0
    %v192 = vsel %vm135, %v184, 0
    %v195 = vsel %vm135, %v185, 0
    %v198 = vsel %vm135, %v186, 0
    %200 = vmatpush.msra.mxu0 0.0
    %201 = vmatpush.msra.mxu0 0.0
    %202 = vmatpush.msra.mxu0 0.0
    %203 = vmatpush.msra.mxu0 0.0
    %204 = vmatpush.msra.mxu0 0.0
    %205 = vmatpush.msra.mxu0 0.0
    %206 = vmatpush.msra.mxu0 0.0
    %207 = vmatpush.msra.mxu0 0.0
    %208 = vmatpush.msra.mxu0 0.0
    %209 = vmatpush.msra.mxu0 0.0
    %210 = vmatpush.msra.mxu0 0.0
    %211 = vmatpush.msra.mxu0 0.0
    %212 = vmatpush.msra.mxu0 0.0
    %213 = vmatpush.msra.mxu0 %v192
    %214 = vmatpush.msra.mxu0 %v181
    %215 = vmatpush.msra.mxu0 %v178
    %216 = vmatmul.f32.gmra.mxu0 %v189
    %v217 = vpop.f32.mrf.mxu0
    %v218 = vadd.f32 0.0, %v217
    %219 = vdwg.mxu0
    %220 = vmatpush.msra.mxu0 0.0
    %221 = vmatpush.msra.mxu0 0.0
    %222 = vmatpush.msra.mxu0 0.0
    %223 = vmatpush.msra.mxu0 0.0
    %224 = vmatpush.msra.mxu0 0.0
    %225 = vmatpush.msra.mxu0 0.0
    %226 = vmatpush.msra.mxu0 0.0
    %227 = vmatpush.msra.mxu0 0.0
    %228 = vmatpush.msra.mxu0 0.0
    %229 = vmatpush.msra.mxu0 0.0
    %230 = vmatpush.msra.mxu0 0.0
    %231 = vmatpush.msra.mxu0 0.0
    %232 = vmatpush.msra.mxu0 0.0
    %233 = vmatpush.msra.mxu0 %v195
    %234 = vmatpush.msra.mxu0 %v182
    %235 = vmatpush.msra.mxu0 %v179
    %236 = vmatmul.f32.gmra.mxu0 %v189
    %v237 = vpop.f32.mrf.mxu0
    %v238 = vadd.f32 0.0, %v237
    %239 = vdwg.mxu0
    %240 = vmatpush.msra.mxu0 0.0
    %241 = vmatpush.msra.mxu0 0.0
    %242 = vmatpush.msra.mxu0 0.0
    %243 = vmatpush.msra.mxu0 0.0
    %244 = vmatpush.msra.mxu0 0.0
    %245 = vmatpush.msra.mxu0 0.0
    %246 = vmatpush.msra.mxu0 0.0
    %247 = vmatpush.msra.mxu0 0.0
    %248 = vmatpush.msra.mxu0 0.0
    %249 = vmatpush.msra.mxu0 0.0
    %250 = vmatpush.msra.mxu0 0.0
    %251 = vmatpush.msra.mxu0 0.0
    %252 = vmatpush.msra.mxu0 0.0
    %253 = vmatpush.msra.mxu0 %v198
    %254 = vmatpush.msra.mxu0 %v183
    %255 = vmatpush.msra.mxu0 %v180
    %256 = vmatmul.f32.gmra.mxu0 %v189
    %v257 = vpop.f32.mrf.mxu0
    %v258 = vadd.f32 0.0, %v257
    %259 = vdwg.mxu0
    %v263 = vrot.slane %v238, 6
    %v264 = vrot.slane %v258, 4
    %vm265 = vcmask 1041408
    %v266 = vsel %vm265, %v218, %v263
    %v267 = vsel %vm135, %v266, %v264
    %v269 = vmul.f32 %v18, %v267
    %vm270 = vcmask 1043458
    %vm271 = vmor %vm270, %vm265
    %vm272 = vcmask 521220
    %vm273 = vmor %vm272, %vm271
    %274 = vst.msk [vmem:[#allocation2] sm:$0x3f] %vm273, %v269
    // Predicated region
    $region18: #{tpu_custom_call.1} parent=1 // pred_check
      _
    $region19: #{tpu_custom_call.1} parent=1 // pred_check_branch
      %276 = sbr.rel (0) target = $region21
    $region20: #{tpu_custom_call.1} parent=1 // pred_region
      %278 = vsyncadd [#allocation3], 0
      %s280 = sshll.u32 [#allocation2], 4
      %s281 = int_to_ptr.vmem [resolvable:$true] %s280
      %s282 = sshll.u32 %s4, 4
      %s283 = int_to_ptr.hbm [resolvable:$true] %s282
      %285 = dma.vmem_to_hbm [thread:$0]  %s281, 96, %s283, [#allocation3]
    $region21: #{tpu_custom_call.1} parent=1 // pred_fallthru
      _
    // Predicated region
    $region22: #{tpu_custom_call.1} parent=1 // pred_check
      _
    $region23: #{tpu_custom_call.1} parent=1 // pred_check_branch
      %287 = sbr.rel (0) target = $region25
    $region24: #{tpu_custom_call.1} parent=1 // pred_region
      %289 = dma.done [#allocation3], 96
    $region25: #{tpu_custom_call.1} parent=1 // pred_fallthru
      _
    %290 = vsyncpa [#allocation3], 1

</llo_original>
